<compile_context>
chip_gen: v6e
topology: v6e:2x2x1
jax: 0.10.0
libtpu: 0.0.40
codegen_flags: <defaults>
</compile_context>

<pallas_src>
import jax
import jax.numpy as jnp
from jax.experimental import pallas as pl
from jax.experimental.pallas import tpu as pltpu


def _round_up(x, m):
    return (x + m - 1) // m * m


# ------------------------------ Pallas kernel --------------------------------

def _bilinear_kernel(x1_ref, x2_ref, w_ref, b_ref, o_ref):
    # dense_1(x1) + dense_1(x2) + bias_value  ==  (x1 + x2) @ W + (2*b + bias_value)
    xs = x1_ref[...] + x2_ref[...]
    acc = jnp.dot(xs, w_ref[...], preferred_element_type=jnp.float32)
    o_ref[...] = (acc + b_ref[...]).astype(o_ref.dtype)


# --------------------------------- wrapper ------------------------------------

def bilinear(x1, x2, w, b, bias_value, *, max_row_tile=2048):
    """BiLinear forward.

    x1, x2     : (B, L, Din)  float32
    w          : (Din, Dout)  float32   (Conv1D dense_1 weight[:, :, 0].T)
    b          : (Dout,)      float32   (Conv1D dense_1 bias, applied to BOTH inputs)
    bias_value : (Dout,)      float32   (extra BiLinear bias parameter)
    """
    B, L, Din = x1.shape
    Dout = w.shape[1]
    N = B * L

    bias_total = 2.0 * b + bias_value                    # folded bias (single add)

    x1f = x1.reshape(N, Din)
    x2f = x2.reshape(N, Din)

    # ---- lane-packing: make the last (lane) dim 128-wide ----------------------
    pack = 1
    if Din == Dout and Din < 128 and 128 % Din == 0:
        pack = 128 // Din
    Nr = _round_up(N, pack)
    if Nr != N:                                          # at most pack-1 rows
        x1f = jnp.pad(x1f, ((0, Nr - N), (0, 0)))
        x2f = jnp.pad(x2f, ((0, Nr - N), (0, 0)))
    if pack > 1:
        x1f = x1f.reshape(Nr // pack, pack * Din)        # free, row-major
        x2f = x2f.reshape(Nr // pack, pack * Din)
        w_p = jnp.kron(jnp.eye(pack, dtype=w.dtype), w)  # block-diagonal weight
        bias_p = jnp.tile(bias_total, pack)
    else:
        w_p, bias_p = w, bias_total
    rows, din_p = x1f.shape
    dout_p = w_p.shape[1]

    # ---- row tiling ------------------------------------------------------------
    # One full tile when it fits; otherwise 2048-row tiles with a ragged last
    # block (Pallas masks the partial store; no jnp.pad / out[:N] HBM round trip).
    row_tile = rows if rows <= max_row_tile else max_row_tile
    grid = (pl.cdiv(rows, row_tile),)

    # TODO(synk): for very large Din/Dout (weight no longer VMEM-resident on
    # v7x's 64 MiB) add a Dout/K tiling grid axis with an f32 VMEM accumulator.
    out = pl.pallas_call(
        _bilinear_kernel,
        out_shape=jax.ShapeDtypeStruct((rows, dout_p), jnp.float32),
        grid=grid,
        in_specs=[
            pl.BlockSpec((row_tile, din_p), lambda i: (i, 0)),
            pl.BlockSpec((row_tile, din_p), lambda i: (i, 0)),
            pl.BlockSpec((din_p, dout_p), lambda i: (0, 0)),
            pl.BlockSpec((1, dout_p), lambda i: (0, 0)),
        ],
        out_specs=pl.BlockSpec((row_tile, dout_p), lambda i: (i, 0)),
        compiler_params=pltpu.CompilerParams(
            dimension_semantics=("parallel",),
        ),
    )(x1f, x2f, w_p, bias_p.reshape(1, dout_p))

    if pack > 1 or Nr != N:
        out = out.reshape(Nr, Dout)[:N]
    return out.reshape(B, L, Dout)


# ----------------------------------- main --------------------------------------

if __name__ == "__main__":
    B, L, Din, Dout = 2, 8, 32, 32

    key = jax.random.PRNGKey(0)
    k1, k2, kw, kb = jax.random.split(key, 4)

    input1 = jax.random.normal(k1, (B, L, Din), jnp.float32)
    input2 = jax.random.normal(k2, (B, L, Din), jnp.float32)

    # dense_1 (Conv1D, kernel_size=1) parameters; dense_2 is unused in forward.
    w = 0.05 * jax.random.normal(kw, (Din, Dout), jnp.float32)
    b = 0.01 * jax.random.normal(kb, (Dout,), jnp.float32)
    bias_value = jnp.zeros((Dout,), jnp.float32)  # nn.Parameter initialized to zeros

    fwd = jax.jit(bilinear)
    out = fwd(input1, input2, w, b, bias_value)
    jax.block_until_ready(out)

    # Pure-JAX reference of the BiLinear forward semantics.
    ref = (input1 @ w + b) + (input2 @ w + b) + bias_value
    assert out.shape == (B, L, Dout) and out.dtype == jnp.float32
    err = float(jnp.max(jnp.abs(out - ref)))
    assert jnp.allclose(out, ref, atol=1e-5, rtol=1e-5), err

    print("KERNEL_OK")
</pallas_src>

<mosaic_0001>
module attributes {stable_mosaic.version = 11 : i64} {
  func.func @_bilinear_kernel(%arg0: i32, %arg1: memref<4x128xf32, #tpu.memory_space<vmem>>, %arg2: memref<4x128xf32, #tpu.memory_space<vmem>>, %arg3: memref<128x128xf32, #tpu.memory_space<vmem>>, %arg4: memref<1x128xf32, #tpu.memory_space<vmem>>, %arg5: memref<4x128xf32, #tpu.memory_space<vmem>>) attributes {dimension_semantics = [#tpu.dimension_semantics<parallel>], iteration_bounds = array<i64: 1>, scalar_prefetch = 0 : i64, scratch_operands = 0 : i64, tpu.core_type = #tpu.core_type<tc>, window_params = [{transform_indices = @transform_0, window_bounds = array<i64: 4, 128>}, {transform_indices = @transform_1, window_bounds = array<i64: 4, 128>}, {pipeline_mode = #tpu.pipeline_mode<synchronous>, transform_indices = @transform_2, window_bounds = array<i64: 128, 128>}, {pipeline_mode = #tpu.pipeline_mode<synchronous>, transform_indices = @transform_3, window_bounds = array<i64: 1, 128>}, {transform_indices = @transform_4, window_bounds = array<i64: 4, 128>}]} {
    %c0 = arith.constant 0 : index
    %c0_0 = arith.constant 0 : index
    %0 = vector.load %arg1[%c0, %c0_0] : memref<4x128xf32, #tpu.memory_space<vmem>>, vector<4x128xf32>
    %c0_1 = arith.constant 0 : index
    %c0_2 = arith.constant 0 : index
    %1 = vector.load %arg2[%c0_1, %c0_2] : memref<4x128xf32, #tpu.memory_space<vmem>>, vector<4x128xf32>
    %2 = arith.addf %0, %1 : vector<4x128xf32>
    %c0_3 = arith.constant 0 : index
    %c0_4 = arith.constant 0 : index
    %3 = vector.load %arg3[%c0_3, %c0_4] : memref<128x128xf32, #tpu.memory_space<vmem>>, vector<128x128xf32>
    %cst = arith.constant dense<0.000000e+00> : vector<4x128xf32>
    %4 = tpu.matmul %2, %3, %cst {dimension_numbers = #tpu.dot_dimension_numbers<[1], [0], [0], [1], [0, 0, 1, 1], [], []>} : vector<4x128xf32>, vector<128x128xf32>, vector<4x128xf32> -> vector<4x128xf32>
    %c0_5 = arith.constant 0 : index
    %c0_6 = arith.constant 0 : index
    %5 = vector.load %arg4[%c0_5, %c0_6] : memref<1x128xf32, #tpu.memory_space<vmem>>, vector<1x128xf32>
    %6 = vector.broadcast %5 : vector<1x128xf32> to vector<4x128xf32>
    %7 = arith.addf %4, %6 : vector<4x128xf32>
    %c0_7 = arith.constant 0 : index
    %c0_8 = arith.constant 0 : index
    %8 = vector.load %arg5[%c0_7, %c0_8] : memref<4x128xf32, #tpu.memory_space<vmem>>, vector<4x128xf32>
    tpu.vector_store %arg5[%c0_7, %c0_8], %7 {strides = array<i32>} : memref<4x128xf32, #tpu.memory_space<vmem>>, vector<4x128xf32>,
    return
  }
  func.func @transform_0(%arg0: i32) -> (i32, i32) {
    %c0_i32 = arith.constant 0 : i32
    %c0_i32_0 = arith.constant 0 : i32
    return %arg0, %c0_i32 : i32, i32
  }
  func.func @transform_1(%arg0: i32) -> (i32, i32) {
    %c0_i32 = arith.constant 0 : i32
    %c0_i32_0 = arith.constant 0 : i32
    return %arg0, %c0_i32 : i32, i32
  }
  func.func @transform_2(%arg0: i32) -> (i32, i32) {
    %c0_i32 = arith.constant 0 : i32
    %c0_i32_0 = arith.constant 0 : i32
    %c0_i32_1 = arith.constant 0 : i32
    return %c0_i32, %c0_i32_0 : i32, i32
  }
  func.func @transform_3(%arg0: i32) -> (i32, i32) {
    %c0_i32 = arith.constant 0 : i32
    %c0_i32_0 = arith.constant 0 : i32
    %c0_i32_1 = arith.constant 0 : i32
    return %c0_i32, %c0_i32_0 : i32, i32
  }
  func.func @transform_4(%arg0: i32) -> (i32, i32) {
    %c0_i32 = arith.constant 0 : i32
    %c0_i32_0 = arith.constant 0 : i32
    return %arg0, %c0_i32 : i32, i32
  }
}

</mosaic_0001>

<llo_original>
// kernel: tile.8
$region0: #{tile.8}
  #allocation0 [shape = 's32[1]{0}', space=sflag, size = 0x4, scoped, tag = 'scoped memory for tile.8']
  %s0 = inlined_call_operand.vmem [shape: f32[32], index: 0, kind: input, shape index: {}]
  %s1 = inlined_call_operand.vmem [shape: f32[4,32], index: 1, kind: output, shape index: {}]
  // Predicated region
  $region2: #{tile.8} parent=0 // pred_check
    _
  $region3: #{tile.8} parent=0 // pred_check_branch
    %3 = sbr.rel (0) target = $region5
  $region4: #{tile.8} parent=0 // pred_region
    _
  $region5: #{tile.8} parent=0 // pred_fallthru
    _
  %v4 = vld [vmem:[%s0] ss:$0 sm:$0xff]
  %5 = vst [vmem:[%s1] sm:$0xf] %v4

// kernel: tile.9
$region0: #{tile.9}
  %s0 = inlined_call_operand.vmem [shape: f32[4,32], index: 0, kind: input, shape index: {}]
  %s1 = inlined_call_operand.vmem [shape: f32[1,128], index: 1, kind: output, shape index: {}]
  $region1: #{tile.9} parent=0
    #allocation0 [shape = 'u8[4096]{0}', space=vmem, size = 0x1000, scoped, tag = 'scoped mem for output reshape']
    #allocation1 [shape = 'u8[4096]{0}', space=vmem, size = 0x1000, scoped, tag = 'scoped mem for input reshape']
    %s3 = sshll.u32 1, 4
    %s4 = ssub.s32 %s3, 1
    %v5 = vld [vmem:[%s0] sm:%s4]
    %6 = vst [vmem:[#allocation1] sm:%s4] %v5
    %v7 = vld [vmem:[#allocation1] sm:$0x1]
    %vm8 = vcmask 261120
    %9 = vst.msk [vmem:[#allocation0] sm:$0x1] %vm8, %v7
    %s10 = scalar_lea.vmem [#allocation1], 3
    %v11 = vld [vmem:[%s10] sm:$0x1]
    %12 = vrot.lane.b32.xlu0 %v11, 96
    %v13 = vpop.permute.xlu0 %12
    %vm14 = vcmask 1048320
    %15 = vst.msk [vmem:[#allocation0] sm:$0x1] %vm14, %v13
    %s16 = scalar_lea.vmem [#allocation1], 2
    %v17 = vld [vmem:[%s16] sm:$0x1]
    %18 = vrot.lane.b32.xlu0 %v17, 64
    %v19 = vpop.permute.xlu0 %18
    %vm20 = vcmask 785920
    %21 = vst.msk [vmem:[#allocation0] sm:$0x1] %vm20, %v19
    %s22 = scalar_lea.vmem [#allocation1], 1
    %v23 = vld [vmem:[%s22] sm:$0x1]
    %24 = vrot.lane.b32.xlu0 %v23, 32
    %v25 = vpop.permute.xlu0 %24
    %vm26 = vcmask 523520
    %27 = vst.msk [vmem:[#allocation0] sm:$0x1] %vm26, %v25
    %s29 = sshll.u32 1, 1
    %s30 = ssub.s32 %s29, 1
    %v32 = vld [vmem:[#allocation0] sm:%s30]
    %s33 = sshll.u32 1, 1
    %s34 = ssub.s32 %s33, 1
    %35 = vst [vmem:[%s1] sm:%s34] %v32

// kernel: bilinear.1
$region0: #{bilinear.1}
  #allocation0 [shape = 'u32[]', space=smem, size = 0x4, offset = 0x4, fixed_abs, tag = 'smem constant byte address 0x4 - core index']
  #allocation1 [shape = 'u32[144,128]{1,0:T(1,128)}', space=vmem, size = 0x12000, scoped, tag = 'internal scratch']
  %s0 = inlined_call_operand.vmem [shape: f32[4,128], index: 0, kind: input, shape index: {}]
  %s1 = inlined_call_operand.vmem [shape: f32[4,128], index: 1, kind: input, shape index: {}]
  %s2 = inlined_call_operand.vmem [shape: f32[128,128], index: 2, kind: input, shape index: {}]
  %s3 = inlined_call_operand.vmem [shape: f32[1,128], index: 3, kind: input, shape index: {}]
  %s4 = inlined_call_operand.vmem [shape: f32[4,128], index: 4, kind: output, shape index: {}]
  %s5 = sld [smem:[#allocation0]]
  $region26: #{bilinear.1} parent=0
    _
  %s7 = ssub.s32 1, %s5
  %s8 = scalar_select 0, %s7, %s5
  // Predicated region
  $region2: #{bilinear.1} parent=0 // pred_check
    _
  $region3: #{bilinear.1} parent=0 // pred_check_branch
    %10 = sbr.rel (0) target = $region5
  $region4: #{bilinear.1} parent=0 // pred_region
    _
  $region5: #{bilinear.1} parent=0 // pred_fallthru
    _
  // Predicated region
  $region6: #{bilinear.1} parent=0 // pred_check
    _
  $region7: #{bilinear.1} parent=0 // pred_check_branch
    %12 = sbr.rel (0) target = $region9
  $region8: #{bilinear.1} parent=0 // pred_region
    _
  $region9: #{bilinear.1} parent=0 // pred_fallthru
    _
  // Predicated region
  $region10: #{bilinear.1} parent=0 // pred_check
    _
  $region11: #{bilinear.1} parent=0 // pred_check_branch
    %14 = sbr.rel (0) target = $region13
  $region12: #{bilinear.1} parent=0 // pred_region
    _
  $region13: #{bilinear.1} parent=0 // pred_fallthru
    _
  // Predicated region
  $region14: #{bilinear.1} parent=0 // pred_check
    _
  $region15: #{bilinear.1} parent=0 // pred_check_branch
    %16 = sbr.rel (0) target = $region17
  $region16: #{bilinear.1} parent=0 // pred_region
    _
  $region17: #{bilinear.1} parent=0 // pred_fallthru
    _
  %v17 = vld [vmem:[%s0] sm:$0xf]
  %v18 = vld [vmem:[%s1] sm:$0xf]
  %v19 = vadd.f32 %v17, %v18
  %v20 = vld [vmem:[%s2] sm:$0xff]
  %v21 = vld [vmem:[%s2 + $0x8] sm:$0xff]
  %v22 = vld [vmem:[%s2 + $0x10] sm:$0xff]
  %v23 = vld [vmem:[%s2 + $0x18] sm:$0xff]
  %v24 = vld [vmem:[%s2 + $0x20] sm:$0xff]
  %v25 = vld [vmem:[%s2 + $0x28] sm:$0xff]
  %v26 = vld [vmem:[%s2 + $0x30] sm:$0xff]
  %v27 = vld [vmem:[%s2 + $0x38] sm:$0xff]
  %v28 = vld [vmem:[%s2 + $0x40] sm:$0xff]
  %v29 = vld [vmem:[%s2 + $0x48] sm:$0xff]
  %v30 = vld [vmem:[%s2 + $0x50] sm:$0xff]
  %v31 = vld [vmem:[%s2 + $0x58] sm:$0xff]
  %v32 = vld [vmem:[%s2 + $0x60] sm:$0xff]
  %v33 = vld [vmem:[%s2 + $0x68] sm:$0xff]
  %v34 = vld [vmem:[%s2 + $0x70] sm:$0xff]
  %v35 = vld [vmem:[%s2 + $0x78] sm:$0xff]
  %v36 = vld [vmem:[%s3] sm:$0x1]
  %v38 = vlaneseq
  %v39 = vshrl.u32 %v38, 7
  %v40 = vsub.s32 0, %v39
  %v41 = vrot.slane %v36, %v40
  %43 = vmatprep.subr.mxu0 0.0
  %44 = vmatpush1.msra.mxu0 %v35
  %45 = vmatprep.subr.mxu0 0.0
  %46 = vmatpush1.msra.mxu0 %v34
  %47 = vmatprep.subr.mxu0 0.0
  %48 = vmatpush1.msra.mxu0 %v33
  %49 = vmatprep.subr.mxu0 0.0
  %50 = vmatpush1.msra.mxu0 %v32
  %51 = vmatprep.subr.mxu0 0.0
  %52 = vmatpush1.msra.mxu0 %v31
  %53 = vmatprep.subr.mxu0 0.0
  %54 = vmatpush1.msra.mxu0 %v30
  %55 = vmatprep.subr.mxu0 0.0
  %56 = vmatpush1.msra.mxu0 %v29
  %57 = vmatprep.subr.mxu0 0.0
  %58 = vmatpush1.msra.mxu0 %v28
  %59 = vmatprep.subr.mxu0 0.0
  %60 = vmatpush1.msra.mxu0 %v27
  %61 = vmatprep.subr.mxu0 0.0
  %62 = vmatpush1.msra.mxu0 %v26
  %63 = vmatprep.subr.mxu0 0.0
  %64 = vmatpush1.msra.mxu0 %v25
  %65 = vmatprep.subr.mxu0 0.0
  %66 = vmatpush1.msra.mxu0 %v24
  %67 = vmatprep.subr.mxu0 0.0
  %68 = vmatpush1.msra.mxu0 %v23
  %69 = vmatprep.subr.mxu0 0.0
  %70 = vmatpush1.msra.mxu0 %v22
  %71 = vmatprep.subr.mxu0 0.0
  %72 = vmatpush1.msra.mxu0 %v21
  %73 = vmatprep.subr.mxu0 0.0
  %74 = vmatpush1.msra.mxu0 %v20
  %75 = vmatprep.subr.mxu0 0.0
  %76 = vmatpush2.msra.mxu0 0.0
  %77 = vmatprep.subr.mxu0 0.0
  %78 = vmatpush2.msra.mxu0 0.0
  %79 = vmatprep.subr.mxu0 0.0
  %80 = vmatpush2.msra.mxu0 0.0
  %81 = vmatprep.subr.mxu0 0.0
  %82 = vmatpush2.msra.mxu0 0.0
  %83 = vmatprep.subr.mxu0 0.0
  %84 = vmatpush2.msra.mxu0 0.0
  %85 = vmatprep.subr.mxu0 0.0
  %86 = vmatpush2.msra.mxu0 0.0
  %87 = vmatprep.subr.mxu0 0.0
  %88 = vmatpush2.msra.mxu0 0.0
  %89 = vmatprep.subr.mxu0 0.0
  %90 = vmatpush2.msra.mxu0 0.0
  %91 = vmatprep.subr.mxu0 0.0
  %92 = vmatpush2.msra.mxu0 0.0
  %93 = vmatprep.subr.mxu0 0.0
  %94 = vmatpush2.msra.mxu0 0.0
  %95 = vmatprep.subr.mxu0 0.0
  %96 = vmatpush2.msra.mxu0 0.0
  %97 = vmatprep.subr.mxu0 0.0
  %98 = vmatpush2.msra.mxu0 0.0
  %99 = vmatprep.subr.mxu0 0.0
  %100 = vmatpush2.msra.mxu0 0.0
  %101 = vmatprep.subr.mxu0 0.0
  %102 = vmatpush2.msra.mxu0 0.0
  %103 = vmatprep.subr.mxu0 0.0
  %104 = vmatpush2.msra.mxu0 0.0
  %105 = vmatprep.subr.mxu0 0.0
  %106 = vmatpush2.msra.mxu0 0.0
  %107 = vmatprep.mubr.f32.mxu0 0.0
  %108 = vmatmul.mubr.f32.gmra.mxu0 %v19
  %v109 = vpop.f32.mrf.mxu0
  %v110 = vadd.f32 %v41, %v109
  %v111 = vpop.f32.mrf.mxu0
  %112 = vdwg.mxu0
  %113 = vst [vmem:[%s4] sm:$0xf] %v110
  // Predicated region
  $region18: #{bilinear.1} parent=0 // pred_check
    _
  $region19: #{bilinear.1} parent=0 // pred_check_branch
    %115 = sbr.rel (0) target = $region21
  $region20: #{bilinear.1} parent=0 // pred_region
    _
  $region21: #{bilinear.1} parent=0 // pred_fallthru
    _
  // Predicated region
  $region22: #{bilinear.1} parent=0 // pred_check
    _
  $region23: #{bilinear.1} parent=0 // pred_check_branch
    %117 = sbr.rel (0) target = $region25
  $region24: #{bilinear.1} parent=0 // pred_region
    _
  $region25: #{bilinear.1} parent=0 // pred_fallthru
    _

</llo_original>
